<compile_context>
chip_gen: v6e
topology: v6e:2x2x1
jax: 0.10.0
libtpu: 0.0.40
codegen_flags: <defaults>
</compile_context>

<pallas_src>
import functools

import jax
import jax.numpy as jnp
from jax.experimental import pallas as pl
from jax.experimental.pallas import tpu as pltpu


LN_EPS = 1e-5


def _round_up(a, b):
    return (a + b - 1) // b * b


def _feature_projection_kernel(x_ref, seg_ref, segt_ref, w_ref, b_ref, o_ref, *,
                               cast_gemm_to_bf16):
    """Fused LayerNorm + (folded) Linear on one packed row-tile.

    x_ref:    (bm, G*C)   G original rows packed per lane-dense row
    seg_ref:  (G*C, G)    segment-sum selector (column j owns lane group j)
    segt_ref: (G, G*C)    segment-broadcast selector (transpose of the above)
    w_ref:    (G*C, G*H)  block-diagonal folded projection weight
    b_ref:    (1, G*H)    packed folded bias
    o_ref:    (bm, G*H)   packed output rows (lane dense)
    """
    g = seg_ref.shape[1]
    c = seg_ref.shape[0] // g
    inv_c = 1.0 / float(c)

    x = x_ref[...].astype(jnp.float32)                  # (bm, G*C)
    seg = seg_ref[...]                                  # (G*C, G)
    segt = segt_ref[...]                                # (G, G*C)

    # Per-original-row LayerNorm statistics in one pass (sum and sum-of-squares)
    # computed as lane-group segment sums on the MXU.
    sums = jnp.dot(x, seg, preferred_element_type=jnp.float32)        # (bm, G)
    sqsums = jnp.dot(x * x, seg, preferred_element_type=jnp.float32)  # (bm, G)
    mean = sums * inv_c
    var = sqsums * inv_c - mean * mean                  # biased var, as torch LN
    rstd = jax.lax.rsqrt(var + LN_EPS)
    shift = -mean * rstd                                # narrow-lane VPU work

    # Broadcast per-row scale/shift back to their lane groups (tiny K=G matmuls
    # on the MXU), then a single wide FMA normalizes the whole tile.
    rstd_b = jnp.dot(rstd, segt, preferred_element_type=jnp.float32)   # (bm, G*C)
    shift_b = jnp.dot(shift, segt, preferred_element_type=jnp.float32) # (bm, G*C)
    xn = x * rstd_b + shift_b

    w = w_ref[...]
    if cast_gemm_to_bf16:
        # v6e/v7x: MXU is bf16-native; LN stats above stay in f32.
        xn = xn.astype(jnp.bfloat16)
        w = w.astype(jnp.bfloat16)

    out = jnp.dot(xn, w, preferred_element_type=jnp.float32)           # (bm, G*H)
    out = out + b_ref[...].astype(jnp.float32)
    # TODO(synk): nn.Dropout(0.1) is identity in eval mode; training-mode dropout
    # (pltpu.prng_seed / prng_random_bits masking) is intentionally not applied.
    o_ref[...] = out.astype(o_ref.dtype)


@functools.partial(jax.jit, static_argnames=("block_m", "cast_gemm_to_bf16"))
def feature_projection(x, gamma, beta, w, b, *, block_m=8192,
                       cast_gemm_to_bf16=False):
    """x: [batch, seq, C] -> [batch, seq, H].  w is [C, H] (torch weight.T)."""
    batch, seq, C = x.shape
    Cw, H = w.shape
    assert Cw == C
    M = batch * seq

    # Lane-packing factor: pack G consecutive rows into one 128-lane-dense row.
    G = 128 // H if (H < 128 and 128 % H == 0) else 1

    # ---- Fold the LayerNorm affine into the projection (wrapper-side) -------
    #   (xn*gamma + beta) @ W + b == xn @ (gamma[:,None]*W) + (beta @ W + b)
    w32 = w.astype(jnp.float32)
    w_fold = gamma.astype(jnp.float32)[:, None] * w32                # (C, H)
    b_fold = beta.astype(jnp.float32) @ w32 + b.astype(jnp.float32)  # (H,)

    # Block-diagonal weight so one matmul produces the lane-packed output,
    # plus segment-sum / broadcast selectors for the per-row LN statistics.
    eye_g = jnp.eye(G, dtype=jnp.float32)
    w_big = jnp.kron(eye_g, w_fold)                              # (G*C, G*H)
    b_big = jnp.tile(b_fold, G).reshape(1, G * H)                # (1, G*H)
    seg_sum = jnp.kron(eye_g, jnp.ones((C, 1), jnp.float32))     # (G*C, G)
    seg_bcast = seg_sum.T                                        # (G, G*C)
    if cast_gemm_to_bf16:
        w_big = w_big.astype(jnp.bfloat16)                       # halve weight DMA

    # ---- Row layout: minimal alignment pad, free lane-dense repack ----------
    M_pad = _round_up(max(M, 1), 8 * G)
    x2d = x.reshape(M, C)
    if M_pad != M:                       # usually a no-op for aligned workloads
        x2d = jnp.pad(x2d, ((0, M_pad - M), (0, 0)))
    Mp = M_pad // G                      # packed rows (multiple of 8)
    x_packed = x2d.reshape(Mp, G * C)    # contiguous row-major repack (free)

    # ---- Tiling: large VMEM-budgeted row tiles, ragged tail via cdiv grid ---
    vmem_budget = 12 * 1024 * 1024                       # double-buffered in+out
    bytes_per_packed_row = 2 * 4 * (G * C + G * H)
    cap = max(8, (vmem_budget // bytes_per_packed_row) // 8 * 8)
    target = _round_up(max(8, pl.cdiv(block_m, G)), 8)
    bm = min(target, cap, Mp)                            # multiple of 8
    grid = (pl.cdiv(Mp, bm),)

    kernel = functools.partial(_feature_projection_kernel,
                               cast_gemm_to_bf16=cast_gemm_to_bf16)

    out_packed = pl.pallas_call(
        kernel,
        out_shape=jax.ShapeDtypeStruct((Mp, G * H), x.dtype),
        grid_spec=pltpu.PrefetchScalarGridSpec(
            num_scalar_prefetch=0,
            grid=grid,
            in_specs=[
                pl.BlockSpec((bm, G * C), lambda i: (i, 0)),     # packed rows
                pl.BlockSpec((G * C, G), lambda i: (0, 0)),      # segment sum
                pl.BlockSpec((G, G * C), lambda i: (0, 0)),      # segment bcast
                pl.BlockSpec((G * C, G * H), lambda i: (0, 0)),  # block-diag W
                pl.BlockSpec((1, G * H), lambda i: (0, 0)),      # packed bias
            ],
            out_specs=pl.BlockSpec((bm, G * H), lambda i: (i, 0)),
        ),
        compiler_params=pltpu.CompilerParams(
            dimension_semantics=("parallel",)),
    )(x_packed, seg_sum, seg_bcast, w_big, b_big)

    # Free row-major un-pack, then drop the padded tail rows.
    out2d = out_packed.reshape(M_pad, H)[:M]
    return out2d.reshape(batch, seq, H)


def _reference(x, gamma, beta, w, b):
    """Pure-JAX reference (eval-mode forward of the torch module)."""
    mean = jnp.mean(x, axis=-1, keepdims=True)
    var = jnp.mean((x - mean) ** 2, axis=-1, keepdims=True)
    xn = (x - mean) / jnp.sqrt(var + LN_EPS)
    y = xn * gamma + beta
    return y @ w + b


if __name__ == "__main__":
    # config: hidden_size=32, in_channels=4 -> out_channels = 32/2*4 = 64
    hidden_size = 32
    in_channels = 4
    out_channels = int(hidden_size / 2 * in_channels)  # 64
    batch, seq = 2, 8

    key = jax.random.PRNGKey(0)
    kx, kg, kb, kw, kbias = jax.random.split(key, 5)

    x = jax.random.normal(kx, (batch, seq, out_channels), dtype=jnp.float32)

    # Deterministic parameter init (shapes from the module's __init__).
    gamma = jnp.ones((out_channels,), jnp.float32) + 0.01 * jax.random.normal(
        kg, (out_channels,), jnp.float32)
    beta = 0.01 * jax.random.normal(kb, (out_channels,), jnp.float32)
    # nn.Linear(out_channels, hidden_size): torch weight is [H, C]; store as [C, H].
    w = jax.random.normal(kw, (out_channels, hidden_size), jnp.float32) * (
        1.0 / jnp.sqrt(out_channels))
    b = 0.01 * jax.random.normal(kbias, (hidden_size,), jnp.float32)

    out = feature_projection(x, gamma, beta, w, b)
    out = jax.block_until_ready(out)

    ref = _reference(x, gamma, beta, w, b)
    assert out.shape == (batch, seq, hidden_size)
    # Tolerance covers TPU matmul-precision differences between the fused
    # kernel (folded/packed matmuls) and the XLA reference.
    assert jnp.allclose(out, ref, atol=1e-2, rtol=1e-2), "mismatch vs reference"

    print("KERNEL_OK")
</pallas_src>

<mosaic_0001>
module attributes {stable_mosaic.version = 11 : i64} {
  func.func @_feature_projection_kernel(%arg0: i32, %arg1: memref<8x256xf32, #tpu.memory_space<vmem>>, %arg2: memref<256x4xf32, #tpu.memory_space<vmem>>, %arg3: memref<4x256xf32, #tpu.memory_space<vmem>>, %arg4: memref<256x128xf32, #tpu.memory_space<vmem>>, %arg5: memref<1x128xf32, #tpu.memory_space<vmem>>, %arg6: memref<8x128xf32, #tpu.memory_space<vmem>>) attributes {dimension_semantics = [#tpu.dimension_semantics<parallel>], iteration_bounds = array<i64: 1>, scalar_prefetch = 0 : i64, scratch_operands = 0 : i64, tpu.core_type = #tpu.core_type<tc>, window_params = [{transform_indices = @transform_0, window_bounds = array<i64: 8, 256>}, {pipeline_mode = #tpu.pipeline_mode<synchronous>, transform_indices = @transform_1, window_bounds = array<i64: 256, 4>}, {pipeline_mode = #tpu.pipeline_mode<synchronous>, transform_indices = @transform_2, window_bounds = array<i64: 4, 256>}, {pipeline_mode = #tpu.pipeline_mode<synchronous>, transform_indices = @transform_3, window_bounds = array<i64: 256, 128>}, {pipeline_mode = #tpu.pipeline_mode<synchronous>, transform_indices = @transform_4, window_bounds = array<i64: 1, 128>}, {transform_indices = @transform_5, window_bounds = array<i64: 8, 128>}]} {
    %c0 = arith.constant 0 : index
    %c0_0 = arith.constant 0 : index
    %0 = vector.load %arg1[%c0, %c0_0] : memref<8x256xf32, #tpu.memory_space<vmem>>, vector<8x256xf32>
    %c0_1 = arith.constant 0 : index
    %c0_2 = arith.constant 0 : index
    %1 = vector.load %arg2[%c0_1, %c0_2] : memref<256x4xf32, #tpu.memory_space<vmem>>, vector<256x4xf32>
    %c0_3 = arith.constant 0 : index
    %c0_4 = arith.constant 0 : index
    %2 = vector.load %arg3[%c0_3, %c0_4] : memref<4x256xf32, #tpu.memory_space<vmem>>, vector<4x256xf32>
    %cst = arith.constant dense<0.000000e+00> : vector<8x4xf32>
    %3 = tpu.matmul %0, %1, %cst {dimension_numbers = #tpu.dot_dimension_numbers<[1], [0], [0], [1], [0, 0, 1, 1], [], []>} : vector<8x256xf32>, vector<256x4xf32>, vector<8x4xf32> -> vector<8x4xf32>
    %4 = arith.mulf %0, %0 : vector<8x256xf32>
    %cst_5 = arith.constant dense<0.000000e+00> : vector<8x4xf32>
    %5 = tpu.matmul %4, %1, %cst_5 {dimension_numbers = #tpu.dot_dimension_numbers<[1], [0], [0], [1], [0, 0, 1, 1], [], []>} : vector<8x256xf32>, vector<256x4xf32>, vector<8x4xf32> -> vector<8x4xf32>
    %cst_6 = arith.constant 1.562500e-02 : f32
    %6 = vector.broadcast %cst_6 : f32 to vector<8x4xf32>
    %7 = arith.mulf %3, %6 : vector<8x4xf32>
    %cst_7 = arith.constant 1.562500e-02 : f32
    %8 = vector.broadcast %cst_7 : f32 to vector<8x4xf32>
    %9 = arith.mulf %5, %8 : vector<8x4xf32>
    %10 = arith.mulf %7, %7 : vector<8x4xf32>
    %11 = arith.subf %9, %10 : vector<8x4xf32>
    %cst_8 = arith.constant 9.99999974E-6 : f32
    %12 = vector.broadcast %cst_8 : f32 to vector<8x4xf32>
    %13 = arith.addf %11, %12 : vector<8x4xf32>
    %14 = math.rsqrt %13 : vector<8x4xf32>
    %cst_9 = arith.constant 0.000000e+00 : f32
    %15 = vector.broadcast %cst_9 : f32 to vector<8x4xf32>
    %16 = arith.subf %15, %7 : vector<8x4xf32>
    %17 = arith.mulf %16, %14 : vector<8x4xf32>
    %cst_10 = arith.constant dense<0.000000e+00> : vector<8x256xf32>
    %18 = tpu.matmul %14, %2, %cst_10 {dimension_numbers = #tpu.dot_dimension_numbers<[1], [0], [0], [1], [0, 0, 1, 1], [], []>} : vector<8x4xf32>, vector<4x256xf32>, vector<8x256xf32> -> vector<8x256xf32>
    %cst_11 = arith.constant dense<0.000000e+00> : vector<8x256xf32>
    %19 = tpu.matmul %17, %2, %cst_11 {dimension_numbers = #tpu.dot_dimension_numbers<[1], [0], [0], [1], [0, 0, 1, 1], [], []>} : vector<8x4xf32>, vector<4x256xf32>, vector<8x256xf32> -> vector<8x256xf32>
    %20 = arith.mulf %0, %18 : vector<8x256xf32>
    %21 = arith.addf %20, %19 : vector<8x256xf32>
    %c0_12 = arith.constant 0 : index
    %c0_13 = arith.constant 0 : index
    %22 = vector.load %arg4[%c0_12, %c0_13] : memref<256x128xf32, #tpu.memory_space<vmem>>, vector<256x128xf32>
    %cst_14 = arith.constant dense<0.000000e+00> : vector<8x128xf32>
    %23 = tpu.matmul %21, %22, %cst_14 {dimension_numbers = #tpu.dot_dimension_numbers<[1], [0], [0], [1], [0, 0, 1, 1], [], []>} : vector<8x256xf32>, vector<256x128xf32>, vector<8x128xf32> -> vector<8x128xf32>
    %c0_15 = arith.constant 0 : index
    %c0_16 = arith.constant 0 : index
    %24 = vector.load %arg5[%c0_15, %c0_16] : memref<1x128xf32, #tpu.memory_space<vmem>>, vector<1x128xf32>
    %25 = vector.broadcast %24 : vector<1x128xf32> to vector<8x128xf32>
    %26 = arith.addf %23, %25 : vector<8x128xf32>
    %c0_17 = arith.constant 0 : index
    %c0_18 = arith.constant 0 : index
    %27 = vector.load %arg6[%c0_17, %c0_18] : memref<8x128xf32, #tpu.memory_space<vmem>>, vector<8x128xf32>
    tpu.vector_store %arg6[%c0_17, %c0_18], %26 {strides = array<i32>} : memref<8x128xf32, #tpu.memory_space<vmem>>, vector<8x128xf32>,
    return
  }
  func.func @transform_0(%arg0: i32) -> (i32, i32) {
    %c0_i32 = arith.constant 0 : i32
    %c0_i32_0 = arith.constant 0 : i32
    return %arg0, %c0_i32 : i32, i32
  }
  func.func @transform_1(%arg0: i32) -> (i32, i32) {
    %c0_i32 = arith.constant 0 : i32
    %c0_i32_0 = arith.constant 0 : i32
    %c0_i32_1 = arith.constant 0 : i32
    return %c0_i32, %c0_i32_0 : i32, i32
  }
  func.func @transform_2(%arg0: i32) -> (i32, i32) {
    %c0_i32 = arith.constant 0 : i32
    %c0_i32_0 = arith.constant 0 : i32
    %c0_i32_1 = arith.constant 0 : i32
    return %c0_i32, %c0_i32_0 : i32, i32
  }
  func.func @transform_3(%arg0: i32) -> (i32, i32) {
    %c0_i32 = arith.constant 0 : i32
    %c0_i32_0 = arith.constant 0 : i32
    %c0_i32_1 = arith.constant 0 : i32
    return %c0_i32, %c0_i32_0 : i32, i32
  }
  func.func @transform_4(%arg0: i32) -> (i32, i32) {
    %c0_i32 = arith.constant 0 : i32
    %c0_i32_0 = arith.constant 0 : i32
    %c0_i32_1 = arith.constant 0 : i32
    return %c0_i32, %c0_i32_0 : i32, i32
  }
  func.func @transform_5(%arg0: i32) -> (i32, i32) {
    %c0_i32 = arith.constant 0 : i32
    %c0_i32_0 = arith.constant 0 : i32
    return %arg0, %c0_i32 : i32, i32
  }
}

</mosaic_0001>

<llo_original>
// kernel: tile.8
$region0: #{tile.8}
  #allocation0 [shape = 's32[1]{0}', space=sflag, size = 0x4, scoped, tag = 'scoped memory for tile.8']
  %s0 = inlined_call_operand.vmem [shape: f32[32], index: 0, kind: input, shape index: {}]
  %s1 = inlined_call_operand.vmem [shape: f32[4,32], index: 1, kind: output, shape index: {}]
  // Predicated region
  $region2: #{tile.8} parent=0 // pred_check
    _
  $region3: #{tile.8} parent=0 // pred_check_branch
    %3 = sbr.rel (0) target = $region5
  $region4: #{tile.8} parent=0 // pred_region
    _
  $region5: #{tile.8} parent=0 // pred_fallthru
    _
  %v4 = vld [vmem:[%s0] ss:$0 sm:$0xff]
  %5 = vst [vmem:[%s1] sm:$0xf] %v4

// kernel: tile.9
$region0: #{tile.9}
  %s0 = inlined_call_operand.vmem [shape: f32[4,32], index: 0, kind: input, shape index: {}]
  %s1 = inlined_call_operand.vmem [shape: f32[1,128], index: 1, kind: output, shape index: {}]
  $region1: #{tile.9} parent=0
    #allocation0 [shape = 'u8[4096]{0}', space=vmem, size = 0x1000, scoped, tag = 'scoped mem for output reshape']
    #allocation1 [shape = 'u8[4096]{0}', space=vmem, size = 0x1000, scoped, tag = 'scoped mem for input reshape']
    %s3 = sshll.u32 1, 4
    %s4 = ssub.s32 %s3, 1
    %v5 = vld [vmem:[%s0] sm:%s4]
    %6 = vst [vmem:[#allocation1] sm:%s4] %v5
    %v7 = vld [vmem:[#allocation1] sm:$0x1]
    %vm8 = vcmask 261120
    %9 = vst.msk [vmem:[#allocation0] sm:$0x1] %vm8, %v7
    %s10 = scalar_lea.vmem [#allocation1], 3
    %v11 = vld [vmem:[%s10] sm:$0x1]
    %12 = vrot.lane.b32.xlu0 %v11, 96
    %v13 = vpop.permute.xlu0 %12
    %vm14 = vcmask 1048320
    %15 = vst.msk [vmem:[#allocation0] sm:$0x1] %vm14, %v13
    %s16 = scalar_lea.vmem [#allocation1], 2
    %v17 = vld [vmem:[%s16] sm:$0x1]
    %18 = vrot.lane.b32.xlu0 %v17, 64
    %v19 = vpop.permute.xlu0 %18
    %vm20 = vcmask 785920
    %21 = vst.msk [vmem:[#allocation0] sm:$0x1] %vm20, %v19
    %s22 = scalar_lea.vmem [#allocation1], 1
    %v23 = vld [vmem:[%s22] sm:$0x1]
    %24 = vrot.lane.b32.xlu0 %v23, 32
    %v25 = vpop.permute.xlu0 %24
    %vm26 = vcmask 523520
    %27 = vst.msk [vmem:[#allocation0] sm:$0x1] %vm26, %v25
    %s29 = sshll.u32 1, 1
    %s30 = ssub.s32 %s29, 1
    %v32 = vld [vmem:[#allocation0] sm:%s30]
    %s33 = sshll.u32 1, 1
    %s34 = ssub.s32 %s33, 1
    %35 = vst [vmem:[%s1] sm:%s34] %v32

// kernel: feature_projection.1
$region0: #{feature_projection.1}
  #allocation0 [shape = 'u32[]', space=smem, size = 0x4, offset = 0x4, fixed_abs, tag = 'smem constant byte address 0x4 - core index']
  #allocation1 [shape = 'u32[144,128]{1,0:T(1,128)}', space=vmem, size = 0x12000, scoped, tag = 'internal scratch']
  %s0 = inlined_call_operand.vmem [shape: f32[8,256], index: 0, kind: input, shape index: {}]
  %s1 = inlined_call_operand.vmem [shape: f32[256,4], index: 1, kind: input, shape index: {}]
  %s2 = inlined_call_operand.vmem [shape: f32[4,256], index: 2, kind: input, shape index: {}]
  %s3 = inlined_call_operand.vmem [shape: f32[256,128], index: 3, kind: input, shape index: {}]
  %s4 = inlined_call_operand.vmem [shape: f32[1,128], index: 4, kind: input, shape index: {}]
  %s5 = inlined_call_operand.vmem [shape: f32[8,128], index: 5, kind: output, shape index: {}]
  %s6 = sld [smem:[#allocation0]]
  $region30: #{feature_projection.1} parent=0
    _
  %s8 = ssub.s32 1, %s6
  %s9 = scalar_select 0, %s8, %s6
  // Predicated region
  $region2: #{feature_projection.1} parent=0 // pred_check
    _
  $region3: #{feature_projection.1} parent=0 // pred_check_branch
    %11 = sbr.rel (0) target = $region5
  $region4: #{feature_projection.1} parent=0 // pred_region
    _
  $region5: #{feature_projection.1} parent=0 // pred_fallthru
    _
  // Predicated region
  $region6: #{feature_projection.1} parent=0 // pred_check
    _
  $region7: #{feature_projection.1} parent=0 // pred_check_branch
    %13 = sbr.rel (0) target = $region9
  $region8: #{feature_projection.1} parent=0 // pred_region
    _
  $region9: #{feature_projection.1} parent=0 // pred_fallthru
    _
  // Predicated region
  $region10: #{feature_projection.1} parent=0 // pred_check
    _
  $region11: #{feature_projection.1} parent=0 // pred_check_branch
    %15 = sbr.rel (0) target = $region13
  $region12: #{feature_projection.1} parent=0 // pred_region
    _
  $region13: #{feature_projection.1} parent=0 // pred_fallthru
    _
  // Predicated region
  $region14: #{feature_projection.1} parent=0 // pred_check
    _
  $region15: #{feature_projection.1} parent=0 // pred_check_branch
    %17 = sbr.rel (0) target = $region17
  $region16: #{feature_projection.1} parent=0 // pred_region
    _
  $region17: #{feature_projection.1} parent=0 // pred_fallthru
    _
  // Predicated region
  $region18: #{feature_projection.1} parent=0 // pred_check
    _
  $region19: #{feature_projection.1} parent=0 // pred_check_branch
    %19 = sbr.rel (0) target = $region21
  $region20: #{feature_projection.1} parent=0 // pred_region
    _
  $region21: #{feature_projection.1} parent=0 // pred_fallthru
    _
  %v20 = vld [vmem:[%s0] sm:$0xff]
  %v21 = vld [vmem:[%s0 + $0x8] sm:$0xff]
  %v22 = vld [vmem:[%s1] sm:$0xff]
  %v23 = vld [vmem:[%s1 + $0x8] sm:$0xff]
  %v24 = vld [vmem:[%s1 + $0x10] sm:$0xff]
  %v25 = vld [vmem:[%s1 + $0x18] sm:$0xff]
  %v26 = vld [vmem:[%s1 + $0x20] sm:$0xff]
  %v27 = vld [vmem:[%s1 + $0x28] sm:$0xff]
  %v28 = vld [vmem:[%s1 + $0x30] sm:$0xff]
  %v29 = vld [vmem:[%s1 + $0x38] sm:$0xff]
  %v30 = vld [vmem:[%s1 + $0x40] sm:$0xff]
  %v31 = vld [vmem:[%s1 + $0x48] sm:$0xff]
  %v32 = vld [vmem:[%s1 + $0x50] sm:$0xff]
  %v33 = vld [vmem:[%s1 + $0x58] sm:$0xff]
  %v34 = vld [vmem:[%s1 + $0x60] sm:$0xff]
  %v35 = vld [vmem:[%s1 + $0x68] sm:$0xff]
  %v36 = vld [vmem:[%s1 + $0x70] sm:$0xff]
  %v37 = vld [vmem:[%s1 + $0x78] sm:$0xff]
  %v38 = vld [vmem:[%s1 + $0x80] sm:$0xff]
  %v39 = vld [vmem:[%s1 + $0x88] sm:$0xff]
  %v40 = vld [vmem:[%s1 + $0x90] sm:$0xff]
  %v41 = vld [vmem:[%s1 + $0x98] sm:$0xff]
  %v42 = vld [vmem:[%s1 + $0xa0] sm:$0xff]
  %v43 = vld [vmem:[%s1 + $0xa8] sm:$0xff]
  %v44 = vld [vmem:[%s1 + $0xb0] sm:$0xff]
  %v45 = vld [vmem:[%s1 + $0xb8] sm:$0xff]
  %v46 = vld [vmem:[%s1 + $0xc0] sm:$0xff]
  %v47 = vld [vmem:[%s1 + $0xc8] sm:$0xff]
  %v48 = vld [vmem:[%s1 + $0xd0] sm:$0xff]
  %v49 = vld [vmem:[%s1 + $0xd8] sm:$0xff]
  %v50 = vld [vmem:[%s1 + $0xe0] sm:$0xff]
  %v51 = vld [vmem:[%s1 + $0xe8] sm:$0xff]
  %v52 = vld [vmem:[%s1 + $0xf0] sm:$0xff]
  %v53 = vld [vmem:[%s1 + $0xf8] sm:$0xff]
  %v54 = vld [vmem:[%s2] sm:$0xff]
  %55 = vmatprep.subr.mxu0 0.0
  %56 = vmatpush1.msra.mxu0 %v37
  %57 = vmatprep.subr.mxu0 0.0
  %58 = vmatpush1.msra.mxu0 %v36
  %59 = vmatprep.subr.mxu0 0.0
  %60 = vmatpush1.msra.mxu0 %v35
  %61 = vmatprep.subr.mxu0 0.0
  %62 = vmatpush1.msra.mxu0 %v34
  %63 = vmatprep.subr.mxu0 0.0
  %64 = vmatpush1.msra.mxu0 %v33
  %65 = vmatprep.subr.mxu0 0.0
  %66 = vmatpush1.msra.mxu0 %v32
  %67 = vmatprep.subr.mxu0 0.0
  %68 = vmatpush1.msra.mxu0 %v31
  %69 = vmatprep.subr.mxu0 0.0
  %70 = vmatpush1.msra.mxu0 %v30
  %71 = vmatprep.subr.mxu0 0.0
  %72 = vmatpush1.msra.mxu0 %v29
  %73 = vmatprep.subr.mxu0 0.0
  %74 = vmatpush1.msra.mxu0 %v28
  %75 = vmatprep.subr.mxu0 0.0
  %76 = vmatpush1.msra.mxu0 %v27
  %77 = vmatprep.subr.mxu0 0.0
  %78 = vmatpush1.msra.mxu0 %v26
  %79 = vmatprep.subr.mxu0 0.0
  %80 = vmatpush1.msra.mxu0 %v25
  %81 = vmatprep.subr.mxu0 0.0
  %82 = vmatpush1.msra.mxu0 %v24
  %83 = vmatprep.subr.mxu0 0.0
  %84 = vmatpush1.msra.mxu0 %v23
  %85 = vmatprep.subr.mxu0 0.0
  %86 = vmatpush1.msra.mxu0 %v22
  %87 = vmatprep.subr.mxu0 0.0
  %88 = vmatpush2.msra.mxu0 %v53
  %89 = vmatprep.subr.mxu0 0.0
  %90 = vmatpush2.msra.mxu0 %v52
  %91 = vmatprep.subr.mxu0 0.0
  %92 = vmatpush2.msra.mxu0 %v51
  %93 = vmatprep.subr.mxu0 0.0
  %94 = vmatpush2.msra.mxu0 %v50
  %95 = vmatprep.subr.mxu0 0.0
  %96 = vmatpush2.msra.mxu0 %v49
  %97 = vmatprep.subr.mxu0 0.0
  %98 = vmatpush2.msra.mxu0 %v48
  %99 = vmatprep.subr.mxu0 0.0
  %100 = vmatpush2.msra.mxu0 %v47
  %101 = vmatprep.subr.mxu0 0.0
  %102 = vmatpush2.msra.mxu0 %v46
  %103 = vmatprep.subr.mxu0 0.0
  %104 = vmatpush2.msra.mxu0 %v45
  %105 = vmatprep.subr.mxu0 0.0
  %106 = vmatpush2.msra.mxu0 %v44
  %107 = vmatprep.subr.mxu0 0.0
  %108 = vmatpush2.msra.mxu0 %v43
  %109 = vmatprep.subr.mxu0 0.0
  %110 = vmatpush2.msra.mxu0 %v42
  %111 = vmatprep.subr.mxu0 0.0
  %112 = vmatpush2.msra.mxu0 %v41
  %113 = vmatprep.subr.mxu0 0.0
  %114 = vmatpush2.msra.mxu0 %v40
  %115 = vmatprep.subr.mxu0 0.0
  %116 = vmatpush2.msra.mxu0 %v39
  %117 = vmatprep.subr.mxu0 0.0
  %118 = vmatpush2.msra.mxu0 %v38
  %119 = vmatprep.mubr.f32.mxu0 %v21
  %120 = vmatmul.mubr.f32.gmra.mxu0 %v20
  %v121 = vpop.f32.mrf.mxu0
  %v122 = vadd.f32 0.0, %v121
  %v123 = vpop.f32.mrf.mxu0
  %124 = vdwg.mxu0
  %v125 = vmul.f32 %v20, %v20
  %v126 = vmul.f32 %v21, %v21
  %127 = vmatprep.subr.mxu0 0.0
  %128 = vmatpush1.msra.mxu0 %v37
  %129 = vmatprep.subr.mxu0 0.0
  %130 = vmatpush1.msra.mxu0 %v36
  %131 = vmatprep.subr.mxu0 0.0
  %132 = vmatpush1.msra.mxu0 %v35
  %133 = vmatprep.subr.mxu0 0.0
  %134 = vmatpush1.msra.mxu0 %v34
  %135 = vmatprep.subr.mxu0 0.0
  %136 = vmatpush1.msra.mxu0 %v33
  %137 = vmatprep.subr.mxu0 0.0
  %138 = vmatpush1.msra.mxu0 %v32
  %139 = vmatprep.subr.mxu0 0.0
  %140 = vmatpush1.msra.mxu0 %v31
  %141 = vmatprep.subr.mxu0 0.0
  %142 = vmatpush1.msra.mxu0 %v30
  %143 = vmatprep.subr.mxu0 0.0
  %144 = vmatpush1.msra.mxu0 %v29
  %145 = vmatprep.subr.mxu0 0.0
  %146 = vmatpush1.msra.mxu0 %v28
  %147 = vmatprep.subr.mxu0 0.0
  %148 = vmatpush1.msra.mxu0 %v27
  %149 = vmatprep.subr.mxu0 0.0
  %150 = vmatpush1.msra.mxu0 %v26
  %151 = vmatprep.subr.mxu0 0.0
  %152 = vmatpush1.msra.mxu0 %v25
  %153 = vmatprep.subr.mxu0 0.0
  %154 = vmatpush1.msra.mxu0 %v24
  %155 = vmatprep.subr.mxu0 0.0
  %156 = vmatpush1.msra.mxu0 %v23
  %157 = vmatprep.subr.mxu0 0.0
  %158 = vmatpush1.msra.mxu0 %v22
  %159 = vmatprep.subr.mxu0 0.0
  %160 = vmatpush2.msra.mxu0 %v53
  %161 = vmatprep.subr.mxu0 0.0
  %162 = vmatpush2.msra.mxu0 %v52
  %163 = vmatprep.subr.mxu0 0.0
  %164 = vmatpush2.msra.mxu0 %v51
  %165 = vmatprep.subr.mxu0 0.0
  %166 = vmatpush2.msra.mxu0 %v50
  %167 = vmatprep.subr.mxu0 0.0
  %168 = vmatpush2.msra.mxu0 %v49
  %169 = vmatprep.subr.mxu0 0.0
  %170 = vmatpush2.msra.mxu0 %v48
  %171 = vmatprep.subr.mxu0 0.0
  %172 = vmatpush2.msra.mxu0 %v47
  %173 = vmatprep.subr.mxu0 0.0
  %174 = vmatpush2.msra.mxu0 %v46
  %175 = vmatprep.subr.mxu0 0.0
  %176 = vmatpush2.msra.mxu0 %v45
  %177 = vmatprep.subr.mxu0 0.0
  %178 = vmatpush2.msra.mxu0 %v44
  %179 = vmatprep.subr.mxu0 0.0
  %180 = vmatpush2.msra.mxu0 %v43
  %181 = vmatprep.subr.mxu0 0.0
  %182 = vmatpush2.msra.mxu0 %v42
  %183 = vmatprep.subr.mxu0 0.0
  %184 = vmatpush2.msra.mxu0 %v41
  %185 = vmatprep.subr.mxu0 0.0
  %186 = vmatpush2.msra.mxu0 %v40
  %187 = vmatprep.subr.mxu0 0.0
  %188 = vmatpush2.msra.mxu0 %v39
  %189 = vmatprep.subr.mxu0 0.0
  %190 = vmatpush2.msra.mxu0 %v38
  %191 = vmatprep.mubr.f32.mxu0 %v126
  %192 = vmatmul.mubr.f32.gmra.mxu0 %v125
  %v193 = vpop.f32.mrf.mxu0
  %v194 = vadd.f32 0.0, %v193
  %v195 = vpop.f32.mrf.mxu0
  %196 = vdwg.mxu0
  %v197 = vmul.f32 %v122, 0.015625
  %v198 = vmul.f32 %v194, 0.015625
  %v199 = vmul.f32 %v197, %v197
  %v200 = vsub.f32 %v198, %v199
  %v201 = vadd.f32 %v200, 1e-05
  %v202 = vrsqrt.pop %v201
  %v203 = vsub.f32 0.0, %v197
  %v204 = vmul.f32 %v203, %v202
  %v206 = vcombine.high %v54, %v54
  %vm207 = vcmask 31744
  %v209 = vsel %vm207, %v202, 0
  %vm211 = vcmask 1043456
  %v212 = vsel %vm211, %v54, 0
  %v214 = vsel %vm211, %v206, 0
  %216 = vmatprep.subr.mxu0 0.0
  %217 = vmatpush1.msra.mxu0 0.0
  %218 = vmatprep.subr.mxu0 0.0
  %219 = vmatpush1.msra.mxu0 0.0
  %220 = vmatprep.subr.mxu0 0.0
  %221 = vmatpush1.msra.mxu0 0.0
  %222 = vmatprep.subr.mxu0 0.0
  %223 = vmatpush1.msra.mxu0 0.0
  %224 = vmatprep.subr.mxu0 0.0
  %225 = vmatpush1.msra.mxu0 0.0
  %226 = vmatprep.subr.mxu0 0.0
  %227 = vmatpush1.msra.mxu0 0.0
  %228 = vmatprep.subr.mxu0 0.0
  %229 = vmatpush1.msra.mxu0 0.0
  %230 = vmatprep.subr.mxu0 0.0
  %231 = vmatpush1.msra.mxu0 0.0
  %232 = vmatprep.subr.mxu0 0.0
  %233 = vmatpush1.msra.mxu0 0.0
  %234 = vmatprep.subr.mxu0 0.0
  %235 = vmatpush1.msra.mxu0 0.0
  %236 = vmatprep.subr.mxu0 0.0
  %237 = vmatpush1.msra.mxu0 0.0
  %238 = vmatprep.subr.mxu0 0.0
  %239 = vmatpush1.msra.mxu0 0.0
  %240 = vmatprep.subr.mxu0 0.0
  %241 = vmatpush1.msra.mxu0 0.0
  %242 = vmatprep.subr.mxu0 0.0
  %243 = vmatpush1.msra.mxu0 0.0
  %244 = vmatprep.subr.mxu0 0.0
  %245 = vmatpush1.msra.mxu0 0.0
  %246 = vmatprep.subr.mxu0 %v214
  %247 = vmatpush1.msra.mxu0 %v212
  %248 = vmatprep.subr.mxu0 0.0
  %249 = vmatpush2.msra.mxu0 0.0
  %250 = vmatprep.subr.mxu0 0.0
  %251 = vmatpush2.msra.mxu0 0.0
  %252 = vmatprep.subr.mxu0 0.0
  %253 = vmatpush2.msra.mxu0 0.0
  %254 = vmatprep.subr.mxu0 0.0
  %255 = vmatpush2.msra.mxu0 0.0
  %256 = vmatprep.subr.mxu0 0.0
  %257 = vmatpush2.msra.mxu0 0.0
  %258 = vmatprep.subr.mxu0 0.0
  %259 = vmatpush2.msra.mxu0 0.0
  %260 = vmatprep.subr.mxu0 0.0
  %261 = vmatpush2.msra.mxu0 0.0
  %262 = vmatprep.subr.mxu0 0.0
  %263 = vmatpush2.msra.mxu0 0.0
  %264 = vmatprep.subr.mxu0 0.0
  %265 = vmatpush2.msra.mxu0 0.0
  %266 = vmatprep.subr.mxu0 0.0
  %267 = vmatpush2.msra.mxu0 0.0
  %268 = vmatprep.subr.mxu0 0.0
  %269 = vmatpush2.msra.mxu0 0.0
  %270 = vmatprep.subr.mxu0 0.0
  %271 = vmatpush2.msra.mxu0 0.0
  %272 = vmatprep.subr.mxu0 0.0
  %273 = vmatpush2.msra.mxu0 0.0
  %274 = vmatprep.subr.mxu0 0.0
  %275 = vmatpush2.msra.mxu0 0.0
  %276 = vmatprep.subr.mxu0 0.0
  %277 = vmatpush2.msra.mxu0 0.0
  %278 = vmatprep.subr.mxu0 0.0
  %279 = vmatpush2.msra.mxu0 0.0
  %280 = vmatprep.mubr.f32.mxu0 0.0
  %281 = vmatmul.mubr.f32.gmra.mxu0 %v209
  %v282 = vpop.f32.mrf.mxu0
  %v283 = vadd.f32 0.0, %v282
  %v284 = vpop.f32.mrf.mxu0
  %v285 = vadd.f32 0.0, %v284
  %286 = vdwg.mxu0
  %v288 = vsel %vm207, %v204, 0
  %290 = vmatprep.subr.mxu0 0.0
  %291 = vmatpush1.msra.mxu0 0.0
  %292 = vmatprep.subr.mxu0 0.0
  %293 = vmatpush1.msra.mxu0 0.0
  %294 = vmatprep.subr.mxu0 0.0
  %295 = vmatpush1.msra.mxu0 0.0
  %296 = vmatprep.subr.mxu0 0.0
  %297 = vmatpush1.msra.mxu0 0.0
  %298 = vmatprep.subr.mxu0 0.0
  %299 = vmatpush1.msra.mxu0 0.0
  %300 = vmatprep.subr.mxu0 0.0
  %301 = vmatpush1.msra.mxu0 0.0
  %302 = vmatprep.subr.mxu0 0.0
  %303 = vmatpush1.msra.mxu0 0.0
  %304 = vmatprep.subr.mxu0 0.0
  %305 = vmatpush1.msra.mxu0 0.0
  %306 = vmatprep.subr.mxu0 0.0
  %307 = vmatpush1.msra.mxu0 0.0
  %308 = vmatprep.subr.mxu0 0.0
  %309 = vmatpush1.msra.mxu0 0.0
  %310 = vmatprep.subr.mxu0 0.0
  %311 = vmatpush1.msra.mxu0 0.0
  %312 = vmatprep.subr.mxu0 0.0
  %313 = vmatpush1.msra.mxu0 0.0
  %314 = vmatprep.subr.mxu0 0.0
  %315 = vmatpush1.msra.mxu0 0.0
  %316 = vmatprep.subr.mxu0 0.0
  %317 = vmatpush1.msra.mxu0 0.0
  %318 = vmatprep.subr.mxu0 0.0
  %319 = vmatpush1.msra.mxu0 0.0
  %320 = vmatprep.subr.mxu0 %v214
  %321 = vmatpush1.msra.mxu0 %v212
  %322 = vmatprep.subr.mxu0 0.0
  %323 = vmatpush2.msra.mxu0 0.0
  %324 = vmatprep.subr.mxu0 0.0
  %325 = vmatpush2.msra.mxu0 0.0
  %326 = vmatprep.subr.mxu0 0.0
  %327 = vmatpush2.msra.mxu0 0.0
  %328 = vmatprep.subr.mxu0 0.0
  %329 = vmatpush2.msra.mxu0 0.0
  %330 = vmatprep.subr.mxu0 0.0
  %331 = vmatpush2.msra.mxu0 0.0
  %332 = vmatprep.subr.mxu0 0.0
  %333 = vmatpush2.msra.mxu0 0.0
  %334 = vmatprep.subr.mxu0 0.0
  %335 = vmatpush2.msra.mxu0 0.0
  %336 = vmatprep.subr.mxu0 0.0
  %337 = vmatpush2.msra.mxu0 0.0
  %338 = vmatprep.subr.mxu0 0.0
  %339 = vmatpush2.msra.mxu0 0.0
  %340 = vmatprep.subr.mxu0 0.0
  %341 = vmatpush2.msra.mxu0 0.0
  %342 = vmatprep.subr.mxu0 0.0
  %343 = vmatpush2.msra.mxu0 0.0
  %344 = vmatprep.subr.mxu0 0.0
  %345 = vmatpush2.msra.mxu0 0.0
  %346 = vmatprep.subr.mxu0 0.0
  %347 = vmatpush2.msra.mxu0 0.0
  %348 = vmatprep.subr.mxu0 0.0
  %349 = vmatpush2.msra.mxu0 0.0
  %350 = vmatprep.subr.mxu0 0.0
  %351 = vmatpush2.msra.mxu0 0.0
  %352 = vmatprep.subr.mxu0 0.0
  %353 = vmatpush2.msra.mxu0 0.0
  %354 = vmatprep.mubr.f32.mxu0 0.0
  %355 = vmatmul.mubr.f32.gmra.mxu0 %v288
  %v356 = vpop.f32.mrf.mxu0
  %v357 = vadd.f32 0.0, %v356
  %v358 = vpop.f32.mrf.mxu0
  %v359 = vadd.f32 0.0, %v358
  %360 = vdwg.mxu0
  %v361 = vmul.f32 %v20, %v283
  %v362 = vmul.f32 %v21, %v285
  %v363 = vadd.f32 %v361, %v357
  %v364 = vadd.f32 %v362, %v359
  %v365 = vld [vmem:[%s3] sm:$0xff]
  %v366 = vld [vmem:[%s3 + $0x8] sm:$0xff]
  %v367 = vld [vmem:[%s3 + $0x10] sm:$0xff]
  %v368 = vld [vmem:[%s3 + $0x18] sm:$0xff]
  %v369 = vld [vmem:[%s3 + $0x20] sm:$0xff]
  %v370 = vld [vmem:[%s3 + $0x28] sm:$0xff]
  %v371 = vld [vmem:[%s3 + $0x30] sm:$0xff]
  %v372 = vld [vmem:[%s3 + $0x38] sm:$0xff]
  %v373 = vld [vmem:[%s3 + $0x40] sm:$0xff]
  %v374 = vld [vmem:[%s3 + $0x48] sm:$0xff]
  %v375 = vld [vmem:[%s3 + $0x50] sm:$0xff]
  %v376 = vld [vmem:[%s3 + $0x58] sm:$0xff]
  %v377 = vld [vmem:[%s3 + $0x60] sm:$0xff]
  %v378 = vld [vmem:[%s3 + $0x68] sm:$0xff]
  %v379 = vld [vmem:[%s3 + $0x70] sm:$0xff]
  %v380 = vld [vmem:[%s3 + $0x78] sm:$0xff]
  %v381 = vld [vmem:[%s3 + $0x80] sm:$0xff]
  %v382 = vld [vmem:[%s3 + $0x88] sm:$0xff]
  %v383 = vld [vmem:[%s3 + $0x90] sm:$0xff]
  %v384 = vld [vmem:[%s3 + $0x98] sm:$0xff]
  %v385 = vld [vmem:[%s3 + $0xa0] sm:$0xff]
  %v386 = vld [vmem:[%s3 + $0xa8] sm:$0xff]
  %v387 = vld [vmem:[%s3 + $0xb0] sm:$0xff]
  %v388 = vld [vmem:[%s3 + $0xb8] sm:$0xff]
  %v389 = vld [vmem:[%s3 + $0xc0] sm:$0xff]
  %v390 = vld [vmem:[%s3 + $0xc8] sm:$0xff]
  %v391 = vld [vmem:[%s3 + $0xd0] sm:$0xff]
  %v392 = vld [vmem:[%s3 + $0xd8] sm:$0xff]
  %v393 = vld [vmem:[%s3 + $0xe0] sm:$0xff]
  %v394 = vld [vmem:[%s3 + $0xe8] sm:$0xff]
  %v395 = vld [vmem:[%s3 + $0xf0] sm:$0xff]
  %v396 = vld [vmem:[%s3 + $0xf8] sm:$0xff]
  %v397 = vld [vmem:[%s4] sm:$0x1]
  %v399 = vlaneseq
  %v400 = vshrl.u32 %v399, 7
  %v401 = vsub.s32 0, %v400
  %v402 = vrot.slane %v397, %v401
  %404 = vmatprep.subr.mxu0 0.0
  %405 = vmatpush1.msra.mxu0 %v380
  %406 = vmatprep.subr.mxu0 0.0
  %407 = vmatpush1.msra.mxu0 %v379
  %408 = vmatprep.subr.mxu0 0.0
  %409 = vmatpush1.msra.mxu0 %v378
  %410 = vmatprep.subr.mxu0 0.0
  %411 = vmatpush1.msra.mxu0 %v377
  %412 = vmatprep.subr.mxu0 0.0
  %413 = vmatpush1.msra.mxu0 %v376
  %414 = vmatprep.subr.mxu0 0.0
  %415 = vmatpush1.msra.mxu0 %v375
  %416 = vmatprep.subr.mxu0 0.0
  %417 = vmatpush1.msra.mxu0 %v374
  %418 = vmatprep.subr.mxu0 0.0
  %419 = vmatpush1.msra.mxu0 %v373
  %420 = vmatprep.subr.mxu0 0.0
  %421 = vmatpush1.msra.mxu0 %v372
  %422 = vmatprep.subr.mxu0 0.0
  %423 = vmatpush1.msra.mxu0 %v371
  %424 = vmatprep.subr.mxu0 0.0
  %425 = vmatpush1.msra.mxu0 %v370
  %426 = vmatprep.subr.mxu0 0.0
  %427 = vmatpush1.msra.mxu0 %v369
  %428 = vmatprep.subr.mxu0 0.0
  %429 = vmatpush1.msra.mxu0 %v368
  %430 = vmatprep.subr.mxu0 0.0
  %431 = vmatpush1.msra.mxu0 %v367
  %432 = vmatprep.subr.mxu0 0.0
  %433 = vmatpush1.msra.mxu0 %v366
  %434 = vmatprep.subr.mxu0 0.0
  %435 = vmatpush1.msra.mxu0 %v365
  %436 = vmatprep.subr.mxu0 0.0
  %437 = vmatpush2.msra.mxu0 %v396
  %438 = vmatprep.subr.mxu0 0.0
  %439 = vmatpush2.msra.mxu0 %v395
  %440 = vmatprep.subr.mxu0 0.0
  %441 = vmatpush2.msra.mxu0 %v394
  %442 = vmatprep.subr.mxu0 0.0
  %443 = vmatpush2.msra.mxu0 %v393
  %444 = vmatprep.subr.mxu0 0.0
  %445 = vmatpush2.msra.mxu0 %v392
  %446 = vmatprep.subr.mxu0 0.0
  %447 = vmatpush2.msra.mxu0 %v391
  %448 = vmatprep.subr.mxu0 0.0
  %449 = vmatpush2.msra.mxu0 %v390
  %450 = vmatprep.subr.mxu0 0.0
  %451 = vmatpush2.msra.mxu0 %v389
  %452 = vmatprep.subr.mxu0 0.0
  %453 = vmatpush2.msra.mxu0 %v388
  %454 = vmatprep.subr.mxu0 0.0
  %455 = vmatpush2.msra.mxu0 %v387
  %456 = vmatprep.subr.mxu0 0.0
  %457 = vmatpush2.msra.mxu0 %v386
  %458 = vmatprep.subr.mxu0 0.0
  %459 = vmatpush2.msra.mxu0 %v385
  %460 = vmatprep.subr.mxu0 0.0
  %461 = vmatpush2.msra.mxu0 %v384
  %462 = vmatprep.subr.mxu0 0.0
  %463 = vmatpush2.msra.mxu0 %v383
  %464 = vmatprep.subr.mxu0 0.0
  %465 = vmatpush2.msra.mxu0 %v382
  %466 = vmatprep.subr.mxu0 0.0
  %467 = vmatpush2.msra.mxu0 %v381
  %468 = vmatprep.mubr.f32.mxu0 %v364
  %469 = vmatmul.mubr.f32.gmra.mxu0 %v363
  %v470 = vpop.f32.mrf.mxu0
  %v471 = vadd.f32 %v402, %v470
  %v472 = vpop.f32.mrf.mxu0
  %473 = vdwg.mxu0
  %474 = vst [vmem:[%s5] sm:$0xff] %v471
  // Predicated region
  $region22: #{feature_projection.1} parent=0 // pred_check
    _
  $region23: #{feature_projection.1} parent=0 // pred_check_branch
    %476 = sbr.rel (0) target = $region25
  $region24: #{feature_projection.1} parent=0 // pred_region
    _
  $region25: #{feature_projection.1} parent=0 // pred_fallthru
    _
  // Predicated region
  $region26: #{feature_projection.1} parent=0 // pred_check
    _
  $region27: #{feature_projection.1} parent=0 // pred_check_branch
    %478 = sbr.rel (0) target = $region29
  $region28: #{feature_projection.1} parent=0 // pred_region
    _
  $region29: #{feature_projection.1} parent=0 // pred_fallthru
    _

</llo_original>
